<compile_context>
chip_gen: v7x
topology: tpu7x:2x2x1
jax: 0.10.0
libtpu: 0.0.40
codegen_flags: <defaults>
</compile_context>

<pallas_src>
import functools

import jax
import jax.numpy as jnp
from jax import lax
from jax.experimental import pallas as pl
from jax.experimental.pallas import tpu as pltpu

N_IN, H1, H2, N_OUT = 3, 5, 5, 2
SUB = 8                      # sublanes per inner chunk -> one f32 vreg / channel
UNIT = SUB * 128             # batch elements per (8,128) vreg slab


def _round_up(n, m):
    return ((n + m - 1) // m) * m


def _mlp_kernel(x_ref, w1_ref, b1_ref, w2_ref, b2_ref, w3_ref, b3_ref, o_ref):
    # x_ref: (3, TBS, 128) VMEM tile (channel-major, batch on sublane+lane).
    # o_ref: (2, TBS, 128) VMEM tile.
    # w*/b*: SMEM-resident scalars (PyTorch layout: W (out,in), b (out,)).
    tbs = x_ref.shape[1]                       # static: sublanes in this tile

    # Hoist all 62 scalar loads out of the chunk loop (live in sregs/SMEM).
    w1 = [[w1_ref[j, k] for k in range(N_IN)] for j in range(H1)]
    b1 = [b1_ref[j] for j in range(H1)]
    w2 = [[w2_ref[j, k] for k in range(H1)] for j in range(H2)]
    b2 = [b2_ref[j] for j in range(H2)]
    w3 = [[w3_ref[j, k] for k in range(H2)] for j in range(N_OUT)]
    b3 = [b3_ref[j] for j in range(N_OUT)]

    def dense(w, b, a, relu):
        # One output channel at a time: acc_j = b_j + sum_k w[j][k] * a_k,
        # every operand a full (SUB,128) vreg, weights are scalars.
        outs = []
        for j in range(len(w)):
            acc = w[j][0] * a[0] + b[j]
            for k in range(1, len(a)):
                acc = acc + w[j][k] * a[k]
            if relu:
                acc = jnp.maximum(acc, 0.0)
            outs.append(acc)
        return outs

    def chunk(c, carry):
        s = pl.multiple_of(c * SUB, SUB)
        x = [x_ref[k, pl.ds(s, SUB), :] for k in range(N_IN)]      # 3 vregs
        h1 = dense(w1, b1, x, relu=True)                           # 5 vregs
        h2 = dense(w2, b2, h1, relu=True)                          # 5 vregs
        y = dense(w3, b3, h2, relu=False)                          # 2 vregs
        for j in range(N_OUT):
            o_ref[j, pl.ds(s, SUB), :] = y[j]
        return carry

    lax.fori_loop(0, tbs // SUB, chunk, 0)


@functools.partial(jax.jit, static_argnames=("tile_b",))
def mlp_forward(x, params, *, tile_b=32768):
    """x: (B, 3) float32.  params: PyTorch-layout weights (out, in), biases (out,)."""
    w1, b1 = params["w1"], params["b1"]
    w2, b2 = params["w2"], params["b2"]
    w3, b3 = params["w3"], params["b3"]

    B = x.shape[0]
    b_pad = _round_up(B, UNIT)

    # Grid sizing: amortize the ~0.35us/step overhead with big tiles, but
    # derive the tile from the batch so padding waste stays <~1 UNIT per
    # step, and force >=2 steps for large batches so the "parallel" grid
    # axis actually feeds both v7x TensorCores.
    steps = -(-b_pad // max(tile_b, UNIT))
    if b_pad >= 2 * UNIT:
        steps = max(steps, 2)
    tb = _round_up(-(-b_pad // steps), UNIT)       # per-step batch elements
    Bp = tb * steps
    TBS = tb // 128                                # sublanes per tile (mult of 8)

    # Channel-major input: (3, Bp/128, 128) — batch fills sublanes AND lanes.
    # NOTE: the x.T / pad / reshape (and the final .T) are wrapper-side layout
    # plumbing to keep the PyTorch (B, 3) interface; callers that can supply
    # channel-major data directly should skip them (they are extra HBM passes
    # comparable to the kernel's own I/O for a kernel this light).
    xt = jnp.pad(x.T, ((0, 0), (0, Bp - B))).reshape(N_IN, Bp // 128, 128)

    smem = pl.BlockSpec(memory_space=pltpu.MemorySpace.SMEM)

    out = pl.pallas_call(
        _mlp_kernel,
        out_shape=jax.ShapeDtypeStruct((N_OUT, Bp // 128, 128), jnp.float32),
        grid=(steps,),
        in_specs=[
            pl.BlockSpec((N_IN, TBS, 128), lambda i: (0, i, 0)),   # x slab
            smem,  # w1 (5,3)
            smem,  # b1 (5,)
            smem,  # w2 (5,5)
            smem,  # b2 (5,)
            smem,  # w3 (2,5)
            smem,  # b3 (2,)
        ],
        out_specs=pl.BlockSpec((N_OUT, TBS, 128), lambda i: (0, i, 0)),
        compiler_params=pltpu.CompilerParams(
            dimension_semantics=("parallel",),     # megacore sharding on v7x
        ),
    )(xt, w1, b1, w2, b2, w3, b3)

    # Back to PyTorch convention: (B, 2), dropping batch padding.
    return out.reshape(N_OUT, Bp)[:, :B].T


def init_params(key):
    """Deterministic init matching nn.Linear shapes: W (out, in), b (out,)."""
    keys = jax.random.split(key, 6)

    def linear(kw, kb, fan_in, fan_out):
        bound = 1.0 / jnp.sqrt(fan_in)
        w = jax.random.uniform(kw, (fan_out, fan_in), jnp.float32, -bound, bound)
        b = jax.random.uniform(kb, (fan_out,), jnp.float32, -bound, bound)
        return w, b

    w1, b1 = linear(keys[0], keys[1], 3, 5)
    w2, b2 = linear(keys[2], keys[3], 5, 5)
    w3, b3 = linear(keys[4], keys[5], 5, 2)
    return {"w1": w1, "b1": b1, "w2": w2, "b2": b2, "w3": w3, "b3": b3}


def mlp_reference(x, p):
    h1 = jnp.maximum(x @ p["w1"].T + p["b1"], 0.0)
    h2 = jnp.maximum(h1 @ p["w2"].T + p["b2"], 0.0)
    return h2 @ p["w3"].T + p["b3"]


if __name__ == "__main__":
    key = jax.random.PRNGKey(0)
    k_x, k_x2, k_p = jax.random.split(key, 3)

    params = init_params(k_p)

    # Small primary check.
    batch = 8
    x = jax.random.normal(k_x, (batch, 3), jnp.float32)
    out = jax.block_until_ready(mlp_forward(x, params))
    ref = mlp_reference(x, params)
    assert out.shape == (batch, 2)
    assert jnp.allclose(out, ref, atol=1e-5, rtol=1e-5)

    # Awkward batch: exercises the multi-step grid + padding path.
    batch2 = 2050
    x2 = jax.random.normal(k_x2, (batch2, 3), jnp.float32)
    out2 = jax.block_until_ready(mlp_forward(x2, params))
    ref2 = mlp_reference(x2, params)
    assert out2.shape == (batch2, 2)
    assert jnp.allclose(out2, ref2, atol=1e-5, rtol=1e-5)

    print("KERNEL_OK")
</pallas_src>

<mosaic_0001>
module attributes {stable_mosaic.version = 11 : i64} {
  func.func @_mlp_kernel(%arg0: i32, %arg1: memref<3x8x128xf32, #tpu.memory_space<vmem>>, %arg2: memref<5x3xf32, #tpu.memory_space<smem>>, %arg3: memref<5xf32, #tpu.memory_space<smem>>, %arg4: memref<5x5xf32, #tpu.memory_space<smem>>, %arg5: memref<5xf32, #tpu.memory_space<smem>>, %arg6: memref<2x5xf32, #tpu.memory_space<smem>>, %arg7: memref<2xf32, #tpu.memory_space<smem>>, %arg8: memref<2x8x128xf32, #tpu.memory_space<vmem>>) attributes {dimension_semantics = [#tpu.dimension_semantics<parallel>], iteration_bounds = array<i64: 1>, scalar_prefetch = 0 : i64, scratch_operands = 0 : i64, tpu.core_type = #tpu.core_type<tc>, window_params = [{transform_indices = @transform_0, window_bounds = array<i64: 3, 8, 128>}, {transform_indices = @transform_1, window_bounds = array<i64: 5, 3>}, {transform_indices = @transform_2, window_bounds = array<i64: 5>}, {transform_indices = @transform_3, window_bounds = array<i64: 5, 5>}, {transform_indices = @transform_4, window_bounds = array<i64: 5>}, {transform_indices = @transform_5, window_bounds = array<i64: 2, 5>}, {transform_indices = @transform_6, window_bounds = array<i64: 2>}, {transform_indices = @transform_7, window_bounds = array<i64: 2, 8, 128>}]} {
    %c0 = arith.constant 0 : index
    %c0_0 = arith.constant 0 : index
    %0 = memref.load %arg2[%c0, %c0_0] : memref<5x3xf32, #tpu.memory_space<smem>>
    %c0_1 = arith.constant 0 : index
    %c1 = arith.constant 1 : index
    %1 = memref.load %arg2[%c0_1, %c1] : memref<5x3xf32, #tpu.memory_space<smem>>
    %c0_2 = arith.constant 0 : index
    %c2 = arith.constant 2 : index
    %2 = memref.load %arg2[%c0_2, %c2] : memref<5x3xf32, #tpu.memory_space<smem>>
    %c1_3 = arith.constant 1 : index
    %c0_4 = arith.constant 0 : index
    %3 = memref.load %arg2[%c1_3, %c0_4] : memref<5x3xf32, #tpu.memory_space<smem>>
    %c1_5 = arith.constant 1 : index
    %c1_6 = arith.constant 1 : index
    %4 = memref.load %arg2[%c1_5, %c1_6] : memref<5x3xf32, #tpu.memory_space<smem>>
    %c1_7 = arith.constant 1 : index
    %c2_8 = arith.constant 2 : index
    %5 = memref.load %arg2[%c1_7, %c2_8] : memref<5x3xf32, #tpu.memory_space<smem>>
    %c2_9 = arith.constant 2 : index
    %c0_10 = arith.constant 0 : index
    %6 = memref.load %arg2[%c2_9, %c0_10] : memref<5x3xf32, #tpu.memory_space<smem>>
    %c2_11 = arith.constant 2 : index
    %c1_12 = arith.constant 1 : index
    %7 = memref.load %arg2[%c2_11, %c1_12] : memref<5x3xf32, #tpu.memory_space<smem>>
    %c2_13 = arith.constant 2 : index
    %c2_14 = arith.constant 2 : index
    %8 = memref.load %arg2[%c2_13, %c2_14] : memref<5x3xf32, #tpu.memory_space<smem>>
    %c3 = arith.constant 3 : index
    %c0_15 = arith.constant 0 : index
    %9 = memref.load %arg2[%c3, %c0_15] : memref<5x3xf32, #tpu.memory_space<smem>>
    %c3_16 = arith.constant 3 : index
    %c1_17 = arith.constant 1 : index
    %10 = memref.load %arg2[%c3_16, %c1_17] : memref<5x3xf32, #tpu.memory_space<smem>>
    %c3_18 = arith.constant 3 : index
    %c2_19 = arith.constant 2 : index
    %11 = memref.load %arg2[%c3_18, %c2_19] : memref<5x3xf32, #tpu.memory_space<smem>>
    %c4 = arith.constant 4 : index
    %c0_20 = arith.constant 0 : index
    %12 = memref.load %arg2[%c4, %c0_20] : memref<5x3xf32, #tpu.memory_space<smem>>
    %c4_21 = arith.constant 4 : index
    %c1_22 = arith.constant 1 : index
    %13 = memref.load %arg2[%c4_21, %c1_22] : memref<5x3xf32, #tpu.memory_space<smem>>
    %c4_23 = arith.constant 4 : index
    %c2_24 = arith.constant 2 : index
    %14 = memref.load %arg2[%c4_23, %c2_24] : memref<5x3xf32, #tpu.memory_space<smem>>
    %c0_25 = arith.constant 0 : index
    %15 = memref.load %arg3[%c0_25] : memref<5xf32, #tpu.memory_space<smem>>
    %c1_26 = arith.constant 1 : index
    %16 = memref.load %arg3[%c1_26] : memref<5xf32, #tpu.memory_space<smem>>
    %c2_27 = arith.constant 2 : index
    %17 = memref.load %arg3[%c2_27] : memref<5xf32, #tpu.memory_space<smem>>
    %c3_28 = arith.constant 3 : index
    %18 = memref.load %arg3[%c3_28] : memref<5xf32, #tpu.memory_space<smem>>
    %c4_29 = arith.constant 4 : index
    %19 = memref.load %arg3[%c4_29] : memref<5xf32, #tpu.memory_space<smem>>
    %c0_30 = arith.constant 0 : index
    %c0_31 = arith.constant 0 : index
    %20 = memref.load %arg4[%c0_30, %c0_31] : memref<5x5xf32, #tpu.memory_space<smem>>
    %c0_32 = arith.constant 0 : index
    %c1_33 = arith.constant 1 : index
    %21 = memref.load %arg4[%c0_32, %c1_33] : memref<5x5xf32, #tpu.memory_space<smem>>
    %c0_34 = arith.constant 0 : index
    %c2_35 = arith.constant 2 : index
    %22 = memref.load %arg4[%c0_34, %c2_35] : memref<5x5xf32, #tpu.memory_space<smem>>
    %c0_36 = arith.constant 0 : index
    %c3_37 = arith.constant 3 : index
    %23 = memref.load %arg4[%c0_36, %c3_37] : memref<5x5xf32, #tpu.memory_space<smem>>
    %c0_38 = arith.constant 0 : index
    %c4_39 = arith.constant 4 : index
    %24 = memref.load %arg4[%c0_38, %c4_39] : memref<5x5xf32, #tpu.memory_space<smem>>
    %c1_40 = arith.constant 1 : index
    %c0_41 = arith.constant 0 : index
    %25 = memref.load %arg4[%c1_40, %c0_41] : memref<5x5xf32, #tpu.memory_space<smem>>
    %c1_42 = arith.constant 1 : index
    %c1_43 = arith.constant 1 : index
    %26 = memref.load %arg4[%c1_42, %c1_43] : memref<5x5xf32, #tpu.memory_space<smem>>
    %c1_44 = arith.constant 1 : index
    %c2_45 = arith.constant 2 : index
    %27 = memref.load %arg4[%c1_44, %c2_45] : memref<5x5xf32, #tpu.memory_space<smem>>
    %c1_46 = arith.constant 1 : index
    %c3_47 = arith.constant 3 : index
    %28 = memref.load %arg4[%c1_46, %c3_47] : memref<5x5xf32, #tpu.memory_space<smem>>
    %c1_48 = arith.constant 1 : index
    %c4_49 = arith.constant 4 : index
    %29 = memref.load %arg4[%c1_48, %c4_49] : memref<5x5xf32, #tpu.memory_space<smem>>
    %c2_50 = arith.constant 2 : index
    %c0_51 = arith.constant 0 : index
    %30 = memref.load %arg4[%c2_50, %c0_51] : memref<5x5xf32, #tpu.memory_space<smem>>
    %c2_52 = arith.constant 2 : index
    %c1_53 = arith.constant 1 : index
    %31 = memref.load %arg4[%c2_52, %c1_53] : memref<5x5xf32, #tpu.memory_space<smem>>
    %c2_54 = arith.constant 2 : index
    %c2_55 = arith.constant 2 : index
    %32 = memref.load %arg4[%c2_54, %c2_55] : memref<5x5xf32, #tpu.memory_space<smem>>
    %c2_56 = arith.constant 2 : index
    %c3_57 = arith.constant 3 : index
    %33 = memref.load %arg4[%c2_56, %c3_57] : memref<5x5xf32, #tpu.memory_space<smem>>
    %c2_58 = arith.constant 2 : index
    %c4_59 = arith.constant 4 : index
    %34 = memref.load %arg4[%c2_58, %c4_59] : memref<5x5xf32, #tpu.memory_space<smem>>
    %c3_60 = arith.constant 3 : index
    %c0_61 = arith.constant 0 : index
    %35 = memref.load %arg4[%c3_60, %c0_61] : memref<5x5xf32, #tpu.memory_space<smem>>
    %c3_62 = arith.constant 3 : index
    %c1_63 = arith.constant 1 : index
    %36 = memref.load %arg4[%c3_62, %c1_63] : memref<5x5xf32, #tpu.memory_space<smem>>
    %c3_64 = arith.constant 3 : index
    %c2_65 = arith.constant 2 : index
    %37 = memref.load %arg4[%c3_64, %c2_65] : memref<5x5xf32, #tpu.memory_space<smem>>
    %c3_66 = arith.constant 3 : index
    %c3_67 = arith.constant 3 : index
    %38 = memref.load %arg4[%c3_66, %c3_67] : memref<5x5xf32, #tpu.memory_space<smem>>
    %c3_68 = arith.constant 3 : index
    %c4_69 = arith.constant 4 : index
    %39 = memref.load %arg4[%c3_68, %c4_69] : memref<5x5xf32, #tpu.memory_space<smem>>
    %c4_70 = arith.constant 4 : index
    %c0_71 = arith.constant 0 : index
    %40 = memref.load %arg4[%c4_70, %c0_71] : memref<5x5xf32, #tpu.memory_space<smem>>
    %c4_72 = arith.constant 4 : index
    %c1_73 = arith.constant 1 : index
    %41 = memref.load %arg4[%c4_72, %c1_73] : memref<5x5xf32, #tpu.memory_space<smem>>
    %c4_74 = arith.constant 4 : index
    %c2_75 = arith.constant 2 : index
    %42 = memref.load %arg4[%c4_74, %c2_75] : memref<5x5xf32, #tpu.memory_space<smem>>
    %c4_76 = arith.constant 4 : index
    %c3_77 = arith.constant 3 : index
    %43 = memref.load %arg4[%c4_76, %c3_77] : memref<5x5xf32, #tpu.memory_space<smem>>
    %c4_78 = arith.constant 4 : index
    %c4_79 = arith.constant 4 : index
    %44 = memref.load %arg4[%c4_78, %c4_79] : memref<5x5xf32, #tpu.memory_space<smem>>
    %c0_80 = arith.constant 0 : index
    %45 = memref.load %arg5[%c0_80] : memref<5xf32, #tpu.memory_space<smem>>
    %c1_81 = arith.constant 1 : index
    %46 = memref.load %arg5[%c1_81] : memref<5xf32, #tpu.memory_space<smem>>
    %c2_82 = arith.constant 2 : index
    %47 = memref.load %arg5[%c2_82] : memref<5xf32, #tpu.memory_space<smem>>
    %c3_83 = arith.constant 3 : index
    %48 = memref.load %arg5[%c3_83] : memref<5xf32, #tpu.memory_space<smem>>
    %c4_84 = arith.constant 4 : index
    %49 = memref.load %arg5[%c4_84] : memref<5xf32, #tpu.memory_space<smem>>
    %c0_85 = arith.constant 0 : index
    %c0_86 = arith.constant 0 : index
    %50 = memref.load %arg6[%c0_85, %c0_86] : memref<2x5xf32, #tpu.memory_space<smem>>
    %c0_87 = arith.constant 0 : index
    %c1_88 = arith.constant 1 : index
    %51 = memref.load %arg6[%c0_87, %c1_88] : memref<2x5xf32, #tpu.memory_space<smem>>
    %c0_89 = arith.constant 0 : index
    %c2_90 = arith.constant 2 : index
    %52 = memref.load %arg6[%c0_89, %c2_90] : memref<2x5xf32, #tpu.memory_space<smem>>
    %c0_91 = arith.constant 0 : index
    %c3_92 = arith.constant 3 : index
    %53 = memref.load %arg6[%c0_91, %c3_92] : memref<2x5xf32, #tpu.memory_space<smem>>
    %c0_93 = arith.constant 0 : index
    %c4_94 = arith.constant 4 : index
    %54 = memref.load %arg6[%c0_93, %c4_94] : memref<2x5xf32, #tpu.memory_space<smem>>
    %c1_95 = arith.constant 1 : index
    %c0_96 = arith.constant 0 : index
    %55 = memref.load %arg6[%c1_95, %c0_96] : memref<2x5xf32, #tpu.memory_space<smem>>
    %c1_97 = arith.constant 1 : index
    %c1_98 = arith.constant 1 : index
    %56 = memref.load %arg6[%c1_97, %c1_98] : memref<2x5xf32, #tpu.memory_space<smem>>
    %c1_99 = arith.constant 1 : index
    %c2_100 = arith.constant 2 : index
    %57 = memref.load %arg6[%c1_99, %c2_100] : memref<2x5xf32, #tpu.memory_space<smem>>
    %c1_101 = arith.constant 1 : index
    %c3_102 = arith.constant 3 : index
    %58 = memref.load %arg6[%c1_101, %c3_102] : memref<2x5xf32, #tpu.memory_space<smem>>
    %c1_103 = arith.constant 1 : index
    %c4_104 = arith.constant 4 : index
    %59 = memref.load %arg6[%c1_103, %c4_104] : memref<2x5xf32, #tpu.memory_space<smem>>
    %c0_105 = arith.constant 0 : index
    %60 = memref.load %arg7[%c0_105] : memref<2xf32, #tpu.memory_space<smem>>
    %c1_106 = arith.constant 1 : index
    %61 = memref.load %arg7[%c1_106] : memref<2xf32, #tpu.memory_space<smem>>
    %c0_i32 = arith.constant 0 : i32
    %c8_i32 = arith.constant 8 : i32
    %62 = arith.muli %c0_i32, %c8_i32 : i32
    %63 = tpu.assume_multiple %62, 8 : i32
    %c0_107 = arith.constant 0 : index
    %64 = arith.index_cast %63 : i32 to index
    %c0_108 = arith.constant 0 : index
    %65 = vector.load %arg1[%c0_107, %64, %c0_108] : memref<3x8x128xf32, #tpu.memory_space<vmem>>, vector<1x8x128xf32>
    %66 = vector.shape_cast %65 : vector<1x8x128xf32> to vector<8x128xf32>
    %c1_109 = arith.constant 1 : index
    %67 = arith.index_cast %63 : i32 to index
    %c0_110 = arith.constant 0 : index
    %68 = vector.load %arg1[%c1_109, %67, %c0_110] : memref<3x8x128xf32, #tpu.memory_space<vmem>>, vector<1x8x128xf32>
    %69 = vector.shape_cast %68 : vector<1x8x128xf32> to vector<8x128xf32>
    %c2_111 = arith.constant 2 : index
    %70 = arith.index_cast %63 : i32 to index
    %c0_112 = arith.constant 0 : index
    %71 = vector.load %arg1[%c2_111, %70, %c0_112] : memref<3x8x128xf32, #tpu.memory_space<vmem>>, vector<1x8x128xf32>
    %72 = vector.shape_cast %71 : vector<1x8x128xf32> to vector<8x128xf32>
    %73 = vector.broadcast %0 : f32 to vector<8x128xf32>
    %74 = arith.mulf %73, %66 : vector<8x128xf32>
    %75 = vector.broadcast %15 : f32 to vector<8x128xf32>
    %76 = arith.addf %74, %75 : vector<8x128xf32>
    %77 = vector.broadcast %1 : f32 to vector<8x128xf32>
    %78 = arith.mulf %77, %69 : vector<8x128xf32>
    %79 = arith.addf %76, %78 : vector<8x128xf32>
    %80 = vector.broadcast %2 : f32 to vector<8x128xf32>
    %81 = arith.mulf %80, %72 : vector<8x128xf32>
    %82 = arith.addf %79, %81 : vector<8x128xf32>
    %cst = arith.constant 0.000000e+00 : f32
    %83 = vector.broadcast %cst : f32 to vector<8x128xf32>
    %84 = arith.maximumf %82, %83 : vector<8x128xf32>
    %85 = vector.broadcast %3 : f32 to vector<8x128xf32>
    %86 = arith.mulf %85, %66 : vector<8x128xf32>
    %87 = vector.broadcast %16 : f32 to vector<8x128xf32>
    %88 = arith.addf %86, %87 : vector<8x128xf32>
    %89 = vector.broadcast %4 : f32 to vector<8x128xf32>
    %90 = arith.mulf %89, %69 : vector<8x128xf32>
    %91 = arith.addf %88, %90 : vector<8x128xf32>
    %92 = vector.broadcast %5 : f32 to vector<8x128xf32>
    %93 = arith.mulf %92, %72 : vector<8x128xf32>
    %94 = arith.addf %91, %93 : vector<8x128xf32>
    %cst_113 = arith.constant 0.000000e+00 : f32
    %95 = vector.broadcast %cst_113 : f32 to vector<8x128xf32>
    %96 = arith.maximumf %94, %95 : vector<8x128xf32>
    %97 = vector.broadcast %6 : f32 to vector<8x128xf32>
    %98 = arith.mulf %97, %66 : vector<8x128xf32>
    %99 = vector.broadcast %17 : f32 to vector<8x128xf32>
    %100 = arith.addf %98, %99 : vector<8x128xf32>
    %101 = vector.broadcast %7 : f32 to vector<8x128xf32>
    %102 = arith.mulf %101, %69 : vector<8x128xf32>
    %103 = arith.addf %100, %102 : vector<8x128xf32>
    %104 = vector.broadcast %8 : f32 to vector<8x128xf32>
    %105 = arith.mulf %104, %72 : vector<8x128xf32>
    %106 = arith.addf %103, %105 : vector<8x128xf32>
    %cst_114 = arith.constant 0.000000e+00 : f32
    %107 = vector.broadcast %cst_114 : f32 to vector<8x128xf32>
    %108 = arith.maximumf %106, %107 : vector<8x128xf32>
    %109 = vector.broadcast %9 : f32 to vector<8x128xf32>
    %110 = arith.mulf %109, %66 : vector<8x128xf32>
    %111 = vector.broadcast %18 : f32 to vector<8x128xf32>
    %112 = arith.addf %110, %111 : vector<8x128xf32>
    %113 = vector.broadcast %10 : f32 to vector<8x128xf32>
    %114 = arith.mulf %113, %69 : vector<8x128xf32>
    %115 = arith.addf %112, %114 : vector<8x128xf32>
    %116 = vector.broadcast %11 : f32 to vector<8x128xf32>
    %117 = arith.mulf %116, %72 : vector<8x128xf32>
    %118 = arith.addf %115, %117 : vector<8x128xf32>
    %cst_115 = arith.constant 0.000000e+00 : f32
    %119 = vector.broadcast %cst_115 : f32 to vector<8x128xf32>
    %120 = arith.maximumf %118, %119 : vector<8x128xf32>
    %121 = vector.broadcast %12 : f32 to vector<8x128xf32>
    %122 = arith.mulf %121, %66 : vector<8x128xf32>
    %123 = vector.broadcast %19 : f32 to vector<8x128xf32>
    %124 = arith.addf %122, %123 : vector<8x128xf32>
    %125 = vector.broadcast %13 : f32 to vector<8x128xf32>
    %126 = arith.mulf %125, %69 : vector<8x128xf32>
    %127 = arith.addf %124, %126 : vector<8x128xf32>
    %128 = vector.broadcast %14 : f32 to vector<8x128xf32>
    %129 = arith.mulf %128, %72 : vector<8x128xf32>
    %130 = arith.addf %127, %129 : vector<8x128xf32>
    %cst_116 = arith.constant 0.000000e+00 : f32
    %131 = vector.broadcast %cst_116 : f32 to vector<8x128xf32>
    %132 = arith.maximumf %130, %131 : vector<8x128xf32>
    %133 = vector.broadcast %20 : f32 to vector<8x128xf32>
    %134 = arith.mulf %133, %84 : vector<8x128xf32>
    %135 = vector.broadcast %45 : f32 to vector<8x128xf32>
    %136 = arith.addf %134, %135 : vector<8x128xf32>
    %137 = vector.broadcast %21 : f32 to vector<8x128xf32>
    %138 = arith.mulf %137, %96 : vector<8x128xf32>
    %139 = arith.addf %136, %138 : vector<8x128xf32>
    %140 = vector.broadcast %22 : f32 to vector<8x128xf32>
    %141 = arith.mulf %140, %108 : vector<8x128xf32>
    %142 = arith.addf %139, %141 : vector<8x128xf32>
    %143 = vector.broadcast %23 : f32 to vector<8x128xf32>
    %144 = arith.mulf %143, %120 : vector<8x128xf32>
    %145 = arith.addf %142, %144 : vector<8x128xf32>
    %146 = vector.broadcast %24 : f32 to vector<8x128xf32>
    %147 = arith.mulf %146, %132 : vector<8x128xf32>
    %148 = arith.addf %145, %147 : vector<8x128xf32>
    %cst_117 = arith.constant 0.000000e+00 : f32
    %149 = vector.broadcast %cst_117 : f32 to vector<8x128xf32>
    %150 = arith.maximumf %148, %149 : vector<8x128xf32>
    %151 = vector.broadcast %25 : f32 to vector<8x128xf32>
    %152 = arith.mulf %151, %84 : vector<8x128xf32>
    %153 = vector.broadcast %46 : f32 to vector<8x128xf32>
    %154 = arith.addf %152, %153 : vector<8x128xf32>
    %155 = vector.broadcast %26 : f32 to vector<8x128xf32>
    %156 = arith.mulf %155, %96 : vector<8x128xf32>
    %157 = arith.addf %154, %156 : vector<8x128xf32>
    %158 = vector.broadcast %27 : f32 to vector<8x128xf32>
    %159 = arith.mulf %158, %108 : vector<8x128xf32>
    %160 = arith.addf %157, %159 : vector<8x128xf32>
    %161 = vector.broadcast %28 : f32 to vector<8x128xf32>
    %162 = arith.mulf %161, %120 : vector<8x128xf32>
    %163 = arith.addf %160, %162 : vector<8x128xf32>
    %164 = vector.broadcast %29 : f32 to vector<8x128xf32>
    %165 = arith.mulf %164, %132 : vector<8x128xf32>
    %166 = arith.addf %163, %165 : vector<8x128xf32>
    %cst_118 = arith.constant 0.000000e+00 : f32
    %167 = vector.broadcast %cst_118 : f32 to vector<8x128xf32>
    %168 = arith.maximumf %166, %167 : vector<8x128xf32>
    %169 = vector.broadcast %30 : f32 to vector<8x128xf32>
    %170 = arith.mulf %169, %84 : vector<8x128xf32>
    %171 = vector.broadcast %47 : f32 to vector<8x128xf32>
    %172 = arith.addf %170, %171 : vector<8x128xf32>
    %173 = vector.broadcast %31 : f32 to vector<8x128xf32>
    %174 = arith.mulf %173, %96 : vector<8x128xf32>
    %175 = arith.addf %172, %174 : vector<8x128xf32>
    %176 = vector.broadcast %32 : f32 to vector<8x128xf32>
    %177 = arith.mulf %176, %108 : vector<8x128xf32>
    %178 = arith.addf %175, %177 : vector<8x128xf32>
    %179 = vector.broadcast %33 : f32 to vector<8x128xf32>
    %180 = arith.mulf %179, %120 : vector<8x128xf32>
    %181 = arith.addf %178, %180 : vector<8x128xf32>
    %182 = vector.broadcast %34 : f32 to vector<8x128xf32>
    %183 = arith.mulf %182, %132 : vector<8x128xf32>
    %184 = arith.addf %181, %183 : vector<8x128xf32>
    %cst_119 = arith.constant 0.000000e+00 : f32
    %185 = vector.broadcast %cst_119 : f32 to vector<8x128xf32>
    %186 = arith.maximumf %184, %185 : vector<8x128xf32>
    %187 = vector.broadcast %35 : f32 to vector<8x128xf32>
    %188 = arith.mulf %187, %84 : vector<8x128xf32>
    %189 = vector.broadcast %48 : f32 to vector<8x128xf32>
    %190 = arith.addf %188, %189 : vector<8x128xf32>
    %191 = vector.broadcast %36 : f32 to vector<8x128xf32>
    %192 = arith.mulf %191, %96 : vector<8x128xf32>
    %193 = arith.addf %190, %192 : vector<8x128xf32>
    %194 = vector.broadcast %37 : f32 to vector<8x128xf32>
    %195 = arith.mulf %194, %108 : vector<8x128xf32>
    %196 = arith.addf %193, %195 : vector<8x128xf32>
    %197 = vector.broadcast %38 : f32 to vector<8x128xf32>
    %198 = arith.mulf %197, %120 : vector<8x128xf32>
    %199 = arith.addf %196, %198 : vector<8x128xf32>
    %200 = vector.broadcast %39 : f32 to vector<8x128xf32>
    %201 = arith.mulf %200, %132 : vector<8x128xf32>
    %202 = arith.addf %199, %201 : vector<8x128xf32>
    %cst_120 = arith.constant 0.000000e+00 : f32
    %203 = vector.broadcast %cst_120 : f32 to vector<8x128xf32>
    %204 = arith.maximumf %202, %203 : vector<8x128xf32>
    %205 = vector.broadcast %40 : f32 to vector<8x128xf32>
    %206 = arith.mulf %205, %84 : vector<8x128xf32>
    %207 = vector.broadcast %49 : f32 to vector<8x128xf32>
    %208 = arith.addf %206, %207 : vector<8x128xf32>
    %209 = vector.broadcast %41 : f32 to vector<8x128xf32>
    %210 = arith.mulf %209, %96 : vector<8x128xf32>
    %211 = arith.addf %208, %210 : vector<8x128xf32>
    %212 = vector.broadcast %42 : f32 to vector<8x128xf32>
    %213 = arith.mulf %212, %108 : vector<8x128xf32>
    %214 = arith.addf %211, %213 : vector<8x128xf32>
    %215 = vector.broadcast %43 : f32 to vector<8x128xf32>
    %216 = arith.mulf %215, %120 : vector<8x128xf32>
    %217 = arith.addf %214, %216 : vector<8x128xf32>
    %218 = vector.broadcast %44 : f32 to vector<8x128xf32>
    %219 = arith.mulf %218, %132 : vector<8x128xf32>
    %220 = arith.addf %217, %219 : vector<8x128xf32>
    %cst_121 = arith.constant 0.000000e+00 : f32
    %221 = vector.broadcast %cst_121 : f32 to vector<8x128xf32>
    %222 = arith.maximumf %220, %221 : vector<8x128xf32>
    %223 = vector.broadcast %50 : f32 to vector<8x128xf32>
    %224 = arith.mulf %223, %150 : vector<8x128xf32>
    %225 = vector.broadcast %60 : f32 to vector<8x128xf32>
    %226 = arith.addf %224, %225 : vector<8x128xf32>
    %227 = vector.broadcast %51 : f32 to vector<8x128xf32>
    %228 = arith.mulf %227, %168 : vector<8x128xf32>
    %229 = arith.addf %226, %228 : vector<8x128xf32>
    %230 = vector.broadcast %52 : f32 to vector<8x128xf32>
    %231 = arith.mulf %230, %186 : vector<8x128xf32>
    %232 = arith.addf %229, %231 : vector<8x128xf32>
    %233 = vector.broadcast %53 : f32 to vector<8x128xf32>
    %234 = arith.mulf %233, %204 : vector<8x128xf32>
    %235 = arith.addf %232, %234 : vector<8x128xf32>
    %236 = vector.broadcast %54 : f32 to vector<8x128xf32>
    %237 = arith.mulf %236, %222 : vector<8x128xf32>
    %238 = arith.addf %235, %237 : vector<8x128xf32>
    %239 = vector.broadcast %55 : f32 to vector<8x128xf32>
    %240 = arith.mulf %239, %150 : vector<8x128xf32>
    %241 = vector.broadcast %61 : f32 to vector<8x128xf32>
    %242 = arith.addf %240, %241 : vector<8x128xf32>
    %243 = vector.broadcast %56 : f32 to vector<8x128xf32>
    %244 = arith.mulf %243, %168 : vector<8x128xf32>
    %245 = arith.addf %242, %244 : vector<8x128xf32>
    %246 = vector.broadcast %57 : f32 to vector<8x128xf32>
    %247 = arith.mulf %246, %186 : vector<8x128xf32>
    %248 = arith.addf %245, %247 : vector<8x128xf32>
    %249 = vector.broadcast %58 : f32 to vector<8x128xf32>
    %250 = arith.mulf %249, %204 : vector<8x128xf32>
    %251 = arith.addf %248, %250 : vector<8x128xf32>
    %252 = vector.broadcast %59 : f32 to vector<8x128xf32>
    %253 = arith.mulf %252, %222 : vector<8x128xf32>
    %254 = arith.addf %251, %253 : vector<8x128xf32>
    %c0_122 = arith.constant 0 : index
    %255 = arith.index_cast %63 : i32 to index
    %c0_123 = arith.constant 0 : index
    %256 = vector.load %arg8[%c0_122, %255, %c0_123] : memref<2x8x128xf32, #tpu.memory_space<vmem>>, vector<1x8x128xf32>
    %257 = vector.shape_cast %256 : vector<1x8x128xf32> to vector<8x128xf32>
    %258 = vector.shape_cast %238 : vector<8x128xf32> to vector<1x8x128xf32>
    tpu.vector_store %arg8[%c0_122, %255, %c0_123], %258 {strides = array<i32>} : memref<2x8x128xf32, #tpu.memory_space<vmem>>, vector<1x8x128xf32>,
    %c1_124 = arith.constant 1 : index
    %259 = arith.index_cast %63 : i32 to index
    %c0_125 = arith.constant 0 : index
    %260 = vector.load %arg8[%c1_124, %259, %c0_125] : memref<2x8x128xf32, #tpu.memory_space<vmem>>, vector<1x8x128xf32>
    %261 = vector.shape_cast %260 : vector<1x8x128xf32> to vector<8x128xf32>
    %262 = vector.shape_cast %254 : vector<8x128xf32> to vector<1x8x128xf32>
    tpu.vector_store %arg8[%c1_124, %259, %c0_125], %262 {strides = array<i32>} : memref<2x8x128xf32, #tpu.memory_space<vmem>>, vector<1x8x128xf32>,
    %c1_i32 = arith.constant 1 : i32
    return
  }
  func.func @transform_0(%arg0: i32) -> (i32, i32, i32) {
    %c0_i32 = arith.constant 0 : i32
    %c0_i32_0 = arith.constant 0 : i32
    %c0_i32_1 = arith.constant 0 : i32
    return %c0_i32, %arg0, %c0_i32_0 : i32, i32, i32
  }
  func.func @transform_1(%arg0: i32) -> (i32, i32) {
    %c0_i32 = arith.constant 0 : i32
    %c0_i32_0 = arith.constant 0 : i32
    %c0_i32_1 = arith.constant 0 : i32
    return %c0_i32, %c0_i32_0 : i32, i32
  }
  func.func @transform_2(%arg0: i32) -> i32 {
    %c0_i32 = arith.constant 0 : i32
    %c0_i32_0 = arith.constant 0 : i32
    return %c0_i32 : i32
  }
  func.func @transform_3(%arg0: i32) -> (i32, i32) {
    %c0_i32 = arith.constant 0 : i32
    %c0_i32_0 = arith.constant 0 : i32
    %c0_i32_1 = arith.constant 0 : i32
    return %c0_i32, %c0_i32_0 : i32, i32
  }
  func.func @transform_4(%arg0: i32) -> i32 {
    %c0_i32 = arith.constant 0 : i32
    %c0_i32_0 = arith.constant 0 : i32
    return %c0_i32 : i32
  }
  func.func @transform_5(%arg0: i32) -> (i32, i32) {
    %c0_i32 = arith.constant 0 : i32
    %c0_i32_0 = arith.constant 0 : i32
    %c0_i32_1 = arith.constant 0 : i32
    return %c0_i32, %c0_i32_0 : i32, i32
  }
  func.func @transform_6(%arg0: i32) -> i32 {
    %c0_i32 = arith.constant 0 : i32
    %c0_i32_0 = arith.constant 0 : i32
    return %c0_i32 : i32
  }
  func.func @transform_7(%arg0: i32) -> (i32, i32, i32) {
    %c0_i32 = arith.constant 0 : i32
    %c0_i32_0 = arith.constant 0 : i32
    %c0_i32_1 = arith.constant 0 : i32
    return %c0_i32, %arg0, %c0_i32_0 : i32, i32, i32
  }
}

</mosaic_0001>

<llo_original>
// kernel: mlp_forward.1
$region0: #{mlp_forward.1}
  #allocation0 [shape = 'u32[]', space=smem, size = 0x4, offset = 0x4, fixed_abs, tag = 'smem constant byte address 0x4 - core index']
  #allocation1 [shape = 'u32[144,128]{1,0:T(1,128)}', space=vmem, size = 0x12000, scoped, tag = 'internal scratch']
  %s0 = inlined_call_operand.vmem [shape: f32[3,8,128], index: 0, kind: input, shape index: {}]
  %s1 = inlined_call_operand.vmem [shape: f32[5,3], index: 1, kind: input, shape index: {}]
  %s2 = inlined_call_operand.vmem [shape: f32[5], index: 2, kind: input, shape index: {}]
  %s3 = inlined_call_operand.vmem [shape: f32[5,5], index: 3, kind: input, shape index: {}]
  %s4 = inlined_call_operand.vmem [shape: f32[5], index: 4, kind: input, shape index: {}]
  %s5 = inlined_call_operand.vmem [shape: f32[2,5], index: 5, kind: input, shape index: {}]
  %s6 = inlined_call_operand.vmem [shape: f32[2], index: 6, kind: input, shape index: {}]
  %s7 = inlined_call_operand.vmem [shape: f32[2,8,128], index: 7, kind: output, shape index: {}]
  %s8 = sld [smem:[#allocation0]]
  $region62: #{mlp_forward.1} parent=0
    _
  %s10 = ssub.s32 1, %s8
  %s11 = scalar_select 0, %s10, %s8
  $region1: #{mlp_forward.1} parent=0
    #allocation2 [shape = 'u8[4096]{0}', space=smem, size = 0x1000, scoped, tag = 'input window, operand 1, single buffered']
    #allocation3 [shape = 's32[1]{0}', space=sflag, size = 0x4, scoped, tag = 'scoped memory for mlp_forward.1']
    #allocation4 [shape = 'u8[512]{0}', space=smem, size = 0x200, scoped, tag = 'input window, operand 2, single buffered']
    #allocation5 [shape = 's32[1]{0}', space=sflag, size = 0x4, scoped, tag = 'scoped memory for mlp_forward.1']
    #allocation6 [shape = 'u8[4096]{0}', space=smem, size = 0x1000, scoped, tag = 'input window, operand 3, single buffered']
    #allocation7 [shape = 'u8[512]{0}', space=smem, size = 0x200, scoped, tag = 'input window, operand 4, single buffered']
    #allocation8 [shape = 's32[1]{0}', space=sflag, size = 0x4, scoped, tag = 'scoped memory for mlp_forward.1']
    #allocation9 [shape = 'u8[1024]{0}', space=smem, size = 0x400, scoped, tag = 'input window, operand 5, single buffered']
    #allocation10 [shape = 'u8[512]{0}', space=smem, size = 0x200, scoped, tag = 'input window, operand 6, single buffered']
    #allocation11 [shape = 's32[1]{0}', space=sflag, size = 0x4, scoped, tag = 'scoped memory for mlp_forward.1']
    %12 = vsyncpa [#allocation3], 0
    %13 = vsyncpa [#allocation5], 0
    %14 = vsyncpa [#allocation8], 0
    %15 = vsyncpa [#allocation11], 0
    // Predicated region
    $region2: #{mlp_forward.1} parent=1 // pred_check
      _
    $region3: #{mlp_forward.1} parent=1 // pred_check_branch
      %17 = sbr.rel (0) target = $region5
    $region4: #{mlp_forward.1} parent=1 // pred_region
      _
    $region5: #{mlp_forward.1} parent=1 // pred_fallthru
      _
    // Predicated region
    $region6: #{mlp_forward.1} parent=1 // pred_check
      _
    $region7: #{mlp_forward.1} parent=1 // pred_check_branch
      %19 = sbr.rel (0) target = $region9
    $region8: #{mlp_forward.1} parent=1 // pred_region
      %s21 = ssub.s32 128, 128
      %22 = vsyncadd [#allocation3], %s21
      %s24 = sshll.u32 %s1, 4
      %s25 = int_to_ptr.vmem [resolvable:$true] %s24
      %27 = dma.vmem_to_smem %s25, 128, [#allocation2], [#allocation3]
    $region9: #{mlp_forward.1} parent=1 // pred_fallthru
      _
    // Predicated region
    $region10: #{mlp_forward.1} parent=1 // pred_check
      _
    $region11: #{mlp_forward.1} parent=1 // pred_check_branch
      %29 = sbr.rel (0) target = $region13
    $region12: #{mlp_forward.1} parent=1 // pred_region
      %s31 = ssub.s32 16, 16
      %32 = vsyncadd [#allocation5], %s31
      %s34 = sshll.u32 %s2, 4
      %s35 = int_to_ptr.vmem [resolvable:$true] %s34
      %37 = dma.vmem_to_smem %s35, 16, [#allocation4], [#allocation5]
    $region13: #{mlp_forward.1} parent=1 // pred_fallthru
      _
    // Predicated region
    $region14: #{mlp_forward.1} parent=1 // pred_check
      _
    $region15: #{mlp_forward.1} parent=1 // pred_check_branch
      %39 = sbr.rel (0) target = $region17
    $region16: #{mlp_forward.1} parent=1 // pred_region
      %s41 = ssub.s32 128, 128
      %42 = vsyncadd [#allocation5], %s41
      %s44 = sshll.u32 %s3, 4
      %s45 = int_to_ptr.vmem [resolvable:$true] %s44
      %47 = dma.vmem_to_smem %s45, 128, [#allocation6], [#allocation5]
    $region17: #{mlp_forward.1} parent=1 // pred_fallthru
      _
    // Predicated region
    $region18: #{mlp_forward.1} parent=1 // pred_check
      _
    $region19: #{mlp_forward.1} parent=1 // pred_check_branch
      %49 = sbr.rel (0) target = $region21
    $region20: #{mlp_forward.1} parent=1 // pred_region
      %s51 = ssub.s32 16, 16
      %52 = vsyncadd [#allocation8], %s51
      %s54 = sshll.u32 %s4, 4
      %s55 = int_to_ptr.vmem [resolvable:$true] %s54
      %57 = dma.vmem_to_smem %s55, 16, [#allocation7], [#allocation8]
    $region21: #{mlp_forward.1} parent=1 // pred_fallthru
      _
    // Predicated region
    $region22: #{mlp_forward.1} parent=1 // pred_check
      _
    $region23: #{mlp_forward.1} parent=1 // pred_check_branch
      %59 = sbr.rel (0) target = $region25
    $region24: #{mlp_forward.1} parent=1 // pred_region
      %s61 = ssub.s32 32, 32
      %62 = vsyncadd [#allocation8], %s61
      %s64 = sshll.u32 %s5, 4
      %s65 = int_to_ptr.vmem [resolvable:$true] %s64
      %67 = dma.vmem_to_smem %s65, 32, [#allocation9], [#allocation8]
    $region25: #{mlp_forward.1} parent=1 // pred_fallthru
      _
    // Predicated region
    $region26: #{mlp_forward.1} parent=1 // pred_check
      _
    $region27: #{mlp_forward.1} parent=1 // pred_check_branch
      %69 = sbr.rel (0) target = $region29
    $region28: #{mlp_forward.1} parent=1 // pred_region
      %s71 = ssub.s32 16, 16
      %72 = vsyncadd [#allocation11], %s71
      %s74 = sshll.u32 %s6, 4
      %s75 = int_to_ptr.vmem [resolvable:$true] %s74
      %77 = dma.vmem_to_smem %s75, 16, [#allocation10], [#allocation11]
    $region29: #{mlp_forward.1} parent=1 // pred_fallthru
      _
    // Predicated region
    $region30: #{mlp_forward.1} parent=1 // pred_check
      _
    $region31: #{mlp_forward.1} parent=1 // pred_check_branch
      %79 = sbr.rel (0) target = $region33
    $region32: #{mlp_forward.1} parent=1 // pred_region
      %80 = dma.done [#allocation3], 128
    $region33: #{mlp_forward.1} parent=1 // pred_fallthru
      _
    // Predicated region
    $region34: #{mlp_forward.1} parent=1 // pred_check
      _
    $region35: #{mlp_forward.1} parent=1 // pred_check_branch
      %82 = sbr.rel (0) target = $region37
    $region36: #{mlp_forward.1} parent=1 // pred_region
      %83 = dma.done [#allocation5], 16
    $region37: #{mlp_forward.1} parent=1 // pred_fallthru
      _
    // Predicated region
    $region38: #{mlp_forward.1} parent=1 // pred_check
      _
    $region39: #{mlp_forward.1} parent=1 // pred_check_branch
      %85 = sbr.rel (0) target = $region41
    $region40: #{mlp_forward.1} parent=1 // pred_region
      %86 = dma.done [#allocation5], 128
    $region41: #{mlp_forward.1} parent=1 // pred_fallthru
      _
    // Predicated region
    $region42: #{mlp_forward.1} parent=1 // pred_check
      _
    $region43: #{mlp_forward.1} parent=1 // pred_check_branch
      %88 = sbr.rel (0) target = $region45
    $region44: #{mlp_forward.1} parent=1 // pred_region
      %89 = dma.done [#allocation8], 16
    $region45: #{mlp_forward.1} parent=1 // pred_fallthru
      _
    // Predicated region
    $region46: #{mlp_forward.1} parent=1 // pred_check
      _
    $region47: #{mlp_forward.1} parent=1 // pred_check_branch
      %91 = sbr.rel (0) target = $region49
    $region48: #{mlp_forward.1} parent=1 // pred_region
      %92 = dma.done [#allocation8], 32
    $region49: #{mlp_forward.1} parent=1 // pred_fallthru
      _
    // Predicated region
    $region50: #{mlp_forward.1} parent=1 // pred_check
      _
    $region51: #{mlp_forward.1} parent=1 // pred_check_branch
      %94 = sbr.rel (0) target = $region53
    $region52: #{mlp_forward.1} parent=1 // pred_region
      %95 = dma.done [#allocation11], 16
    $region53: #{mlp_forward.1} parent=1 // pred_fallthru
      _
    %96 = sfence
    %s97 = sld [smem:[#allocation2]]
    %s98 = sld [smem:[#allocation2 + $0x1]]
    %s99 = sld [smem:[#allocation2 + $0x2]]
    %s100 = sld [smem:[#allocation2 + $0x80]]
    %s101 = sld [smem:[#allocation2 + $0x81]]
    %s102 = sld [smem:[#allocation2 + $0x82]]
    %s103 = sld [smem:[#allocation2 + $0x100]]
    %s104 = sld [smem:[#allocation2 + $0x101]]
    %s105 = sld [smem:[#allocation2 + $0x102]]
    %s106 = sld [smem:[#allocation2 + $0x180]]
    %s107 = sld [smem:[#allocation2 + $0x181]]
    %s108 = sld [smem:[#allocation2 + $0x182]]
    %s109 = sld [smem:[#allocation2 + $0x200]]
    %s110 = sld [smem:[#allocation2 + $0x201]]
    %s111 = sld [smem:[#allocation2 + $0x202]]
    %s112 = sld [smem:[#allocation4]]
    %s113 = sld [smem:[#allocation4 + $0x1]]
    %s114 = sld [smem:[#allocation4 + $0x2]]
    %s115 = sld [smem:[#allocation4 + $0x3]]
    %s116 = sld [smem:[#allocation4 + $0x4]]
    %s117 = sld [smem:[#allocation6]]
    %s118 = sld [smem:[#allocation6 + $0x1]]
    %s119 = sld [smem:[#allocation6 + $0x2]]
    %s120 = sld [smem:[#allocation6 + $0x3]]
    %s121 = sld [smem:[#allocation6 + $0x4]]
    %s122 = sld [smem:[#allocation6 + $0x80]]
    %s123 = sld [smem:[#allocation6 + $0x81]]
    %s124 = sld [smem:[#allocation6 + $0x82]]
    %s125 = sld [smem:[#allocation6 + $0x83]]
    %s126 = sld [smem:[#allocation6 + $0x84]]
    %s127 = sld [smem:[#allocation6 + $0x100]]
    %s128 = sld [smem:[#allocation6 + $0x101]]
    %s129 = sld [smem:[#allocation6 + $0x102]]
    %s130 = sld [smem:[#allocation6 + $0x103]]
    %s131 = sld [smem:[#allocation6 + $0x104]]
    %s132 = sld [smem:[#allocation6 + $0x180]]
    %s133 = sld [smem:[#allocation6 + $0x181]]
    %s134 = sld [smem:[#allocation6 + $0x182]]
    %s135 = sld [smem:[#allocation6 + $0x183]]
    %s136 = sld [smem:[#allocation6 + $0x184]]
    %s137 = sld [smem:[#allocation6 + $0x200]]
    %s138 = sld [smem:[#allocation6 + $0x201]]
    %s139 = sld [smem:[#allocation6 + $0x202]]
    %s140 = sld [smem:[#allocation6 + $0x203]]
    %s141 = sld [smem:[#allocation6 + $0x204]]
    %s142 = sld [smem:[#allocation7]]
    %s143 = sld [smem:[#allocation7 + $0x1]]
    %s144 = sld [smem:[#allocation7 + $0x2]]
    %s145 = sld [smem:[#allocation7 + $0x3]]
    %s146 = sld [smem:[#allocation7 + $0x4]]
    %s147 = sld [smem:[#allocation9]]
    %s148 = sld [smem:[#allocation9 + $0x1]]
    %s149 = sld [smem:[#allocation9 + $0x2]]
    %s150 = sld [smem:[#allocation9 + $0x3]]
    %s151 = sld [smem:[#allocation9 + $0x4]]
    %s152 = sld [smem:[#allocation9 + $0x80]]
    %s153 = sld [smem:[#allocation9 + $0x81]]
    %s154 = sld [smem:[#allocation9 + $0x82]]
    %s155 = sld [smem:[#allocation9 + $0x83]]
    %s156 = sld [smem:[#allocation9 + $0x84]]
    %s157 = sld [smem:[#allocation10]]
    %s158 = sld [smem:[#allocation10 + $0x1]]
    %v159 = vld [vmem:[%s0] sm:$0xff]
    %s160 = sadd.s32 0, 8
    %s161 = scalar_lea.vmem %s0, %s160
    %v162 = vld [vmem:[%s161] sm:$0xff]
    %s163 = sadd.s32 0, 16
    %s164 = scalar_lea.vmem %s0, %s163
    %v165 = vld [vmem:[%s164] sm:$0xff]
    %v166 = vstv %s97
    %v167 = vmul.f32 %v166, %v159
    %v168 = vstv %s112
    %v169 = vadd.f32 %v167, %v168
    %v170 = vstv %s98
    %v171 = vmul.f32 %v170, %v162
    %v172 = vadd.f32 %v169, %v171
    %v173 = vstv %s99
    %v174 = vmul.f32 %v173, %v165
    %v175 = vadd.f32 %v172, %v174
    %v176 = vmax.f32 %v175, 0.0
    %v177 = vstv %s100
    %v178 = vmul.f32 %v177, %v159
    %v179 = vstv %s113
    %v180 = vadd.f32 %v178, %v179
    %v181 = vstv %s101
    %v182 = vmul.f32 %v181, %v162
    %v183 = vadd.f32 %v180, %v182
    %v184 = vstv %s102
    %v185 = vmul.f32 %v184, %v165
    %v186 = vadd.f32 %v183, %v185
    %v187 = vmax.f32 %v186, 0.0
    %v188 = vstv %s103
    %v189 = vmul.f32 %v188, %v159
    %v190 = vstv %s114
    %v191 = vadd.f32 %v189, %v190
    %v192 = vstv %s104
    %v193 = vmul.f32 %v192, %v162
    %v194 = vadd.f32 %v191, %v193
    %v195 = vstv %s105
    %v196 = vmul.f32 %v195, %v165
    %v197 = vadd.f32 %v194, %v196
    %v198 = vmax.f32 %v197, 0.0
    %v199 = vstv %s106
    %v200 = vmul.f32 %v199, %v159
    %v201 = vstv %s115
    %v202 = vadd.f32 %v200, %v201
    %v203 = vstv %s107
    %v204 = vmul.f32 %v203, %v162
    %v205 = vadd.f32 %v202, %v204
    %v206 = vstv %s108
    %v207 = vmul.f32 %v206, %v165
    %v208 = vadd.f32 %v205, %v207
    %v209 = vmax.f32 %v208, 0.0
    %v210 = vstv %s109
    %v211 = vmul.f32 %v210, %v159
    %v212 = vstv %s116
    %v213 = vadd.f32 %v211, %v212
    %v214 = vstv %s110
    %v215 = vmul.f32 %v214, %v162
    %v216 = vadd.f32 %v213, %v215
    %v217 = vstv %s111
    %v218 = vmul.f32 %v217, %v165
    %v219 = vadd.f32 %v216, %v218
    %v220 = vmax.f32 %v219, 0.0
    %v221 = vstv %s117
    %v222 = vmul.f32 %v221, %v176
    %v223 = vstv %s142
    %v224 = vadd.f32 %v222, %v223
    %v225 = vstv %s118
    %v226 = vmul.f32 %v225, %v187
    %v227 = vadd.f32 %v224, %v226
    %v228 = vstv %s119
    %v229 = vmul.f32 %v228, %v198
    %v230 = vadd.f32 %v227, %v229
    %v231 = vstv %s120
    %v232 = vmul.f32 %v231, %v209
    %v233 = vadd.f32 %v230, %v232
    %v234 = vstv %s121
    %v235 = vmul.f32 %v234, %v220
    %v236 = vadd.f32 %v233, %v235
    %v237 = vmax.f32 %v236, 0.0
    %v238 = vstv %s122
    %v239 = vmul.f32 %v238, %v176
    %v240 = vstv %s143
    %v241 = vadd.f32 %v239, %v240
    %v242 = vstv %s123
    %v243 = vmul.f32 %v242, %v187
    %v244 = vadd.f32 %v241, %v243
    %v245 = vstv %s124
    %v246 = vmul.f32 %v245, %v198
    %v247 = vadd.f32 %v244, %v246
    %v248 = vstv %s125
    %v249 = vmul.f32 %v248, %v209
    %v250 = vadd.f32 %v247, %v249
    %v251 = vstv %s126
    %v252 = vmul.f32 %v251, %v220
    %v253 = vadd.f32 %v250, %v252
    %v254 = vmax.f32 %v253, 0.0
    %v255 = vstv %s127
    %v256 = vmul.f32 %v255, %v176
    %v257 = vstv %s144
    %v258 = vadd.f32 %v256, %v257
    %v259 = vstv %s128
    %v260 = vmul.f32 %v259, %v187
    %v261 = vadd.f32 %v258, %v260
    %v262 = vstv %s129
    %v263 = vmul.f32 %v262, %v198
    %v264 = vadd.f32 %v261, %v263
    %v265 = vstv %s130
    %v266 = vmul.f32 %v265, %v209
    %v267 = vadd.f32 %v264, %v266
    %v268 = vstv %s131
    %v269 = vmul.f32 %v268, %v220
    %v270 = vadd.f32 %v267, %v269
    %v271 = vmax.f32 %v270, 0.0
    %v272 = vstv %s132
    %v273 = vmul.f32 %v272, %v176
    %v274 = vstv %s145
    %v275 = vadd.f32 %v273, %v274
    %v276 = vstv %s133
    %v277 = vmul.f32 %v276, %v187
    %v278 = vadd.f32 %v275, %v277
    %v279 = vstv %s134
    %v280 = vmul.f32 %v279, %v198
    %v281 = vadd.f32 %v278, %v280
    %v282 = vstv %s135
    %v283 = vmul.f32 %v282, %v209
    %v284 = vadd.f32 %v281, %v283
    %v285 = vstv %s136
    %v286 = vmul.f32 %v285, %v220
    %v287 = vadd.f32 %v284, %v286
    %v288 = vmax.f32 %v287, 0.0
    %v289 = vstv %s137
    %v290 = vmul.f32 %v289, %v176
    %v291 = vstv %s146
    %v292 = vadd.f32 %v290, %v291
    %v293 = vstv %s138
    %v294 = vmul.f32 %v293, %v187
    %v295 = vadd.f32 %v292, %v294
    %v296 = vstv %s139
    %v297 = vmul.f32 %v296, %v198
    %v298 = vadd.f32 %v295, %v297
    %v299 = vstv %s140
    %v300 = vmul.f32 %v299, %v209
    %v301 = vadd.f32 %v298, %v300
    %v302 = vstv %s141
    %v303 = vmul.f32 %v302, %v220
    %v304 = vadd.f32 %v301, %v303
    %v305 = vmax.f32 %v304, 0.0
    %v306 = vstv %s147
    %v307 = vmul.f32 %v306, %v237
    %v308 = vstv %s157
    %v309 = vadd.f32 %v307, %v308
    %v310 = vstv %s148
    %v311 = vmul.f32 %v310, %v254
    %v312 = vadd.f32 %v309, %v311
    %v313 = vstv %s149
    %v314 = vmul.f32 %v313, %v271
    %v315 = vadd.f32 %v312, %v314
    %v316 = vstv %s150
    %v317 = vmul.f32 %v316, %v288
    %v318 = vadd.f32 %v315, %v317
    %v319 = vstv %s151
    %v320 = vmul.f32 %v319, %v305
    %v321 = vadd.f32 %v318, %v320
    %v322 = vstv %s152
    %v323 = vmul.f32 %v322, %v237
    %v324 = vstv %s158
    %v325 = vadd.f32 %v323, %v324
    %v326 = vstv %s153
    %v327 = vmul.f32 %v326, %v254
    %v328 = vadd.f32 %v325, %v327
    %v329 = vstv %s154
    %v330 = vmul.f32 %v329, %v271
    %v331 = vadd.f32 %v328, %v330
    %v332 = vstv %s155
    %v333 = vmul.f32 %v332, %v288
    %v334 = vadd.f32 %v331, %v333
    %v335 = vstv %s156
    %v336 = vmul.f32 %v335, %v305
    %v337 = vadd.f32 %v334, %v336
    %338 = vst [vmem:[%s7] sm:$0xff] %v321
    %s339 = scalar_lea.vmem %s7, %s160
    %340 = vst [vmem:[%s339] sm:$0xff] %v337
    // Predicated region
    $region54: #{mlp_forward.1} parent=1 // pred_check
      _
    $region55: #{mlp_forward.1} parent=1 // pred_check_branch
      %342 = sbr.rel (0) target = $region57
    $region56: #{mlp_forward.1} parent=1 // pred_region
      _
    $region57: #{mlp_forward.1} parent=1 // pred_fallthru
      _
    // Predicated region
    $region58: #{mlp_forward.1} parent=1 // pred_check
      _
    $region59: #{mlp_forward.1} parent=1 // pred_check_branch
      %344 = sbr.rel (0) target = $region61
    $region60: #{mlp_forward.1} parent=1 // pred_region
      _
    $region61: #{mlp_forward.1} parent=1 // pred_fallthru
      _
    %345 = vsyncpa [#allocation3], 1
    %346 = vsyncpa [#allocation5], 1
    %347 = vsyncpa [#allocation8], 1
    %348 = vsyncpa [#allocation11], 1

</llo_original>
